<compile_context>
chip_gen: v7x
topology: tpu7x:2x2x1
jax: 0.10.0
libtpu: 0.0.40
codegen_flags: <defaults>
</compile_context>

<pallas_src>
import jax
import jax.numpy as jnp
from jax.experimental import pallas as pl
from jax.experimental.pallas import tpu as pltpu


# ---------------------------------------------------------------------------
# Fused kernel: projections + full_attention_conv + head-mean, single step.
# ---------------------------------------------------------------------------
def _fused_transconv_kernel(xq_ref, xs_ref, wq_ref, bq_ref, wkv_ref, bkv_ref,
                            mask_ref, hsel_ref, hselt_ref, avg_ref, o_ref):
    HD = wq_ref.shape[1]
    n_f = float(xq_ref.shape[0])

    # --- projections: bf16 MXU operands, f32 accumulation, f32 bias add ---
    xq = xq_ref[...].astype(jnp.bfloat16)
    xs = xs_ref[...].astype(jnp.bfloat16)
    q = jnp.dot(xq, wq_ref[...], preferred_element_type=jnp.float32) + bq_ref[...]
    kv = jnp.dot(xs, wkv_ref[...], preferred_element_type=jnp.float32) + bkv_ref[...]
    k = kv[:, :HD]          # [N, HD]
    v = kv[:, HD:]          # [N, HD]

    # --- global Frobenius-norm scaling, factored onto the tiny kvs / ks_sum ---
    # c = 1 / (||q||_F * ||k||_F), computed as rsqrt(sq)*rsqrt(sk) for robustness.
    c = (jax.lax.rsqrt(jnp.sum(q * q, keepdims=True)) *
         jax.lax.rsqrt(jnp.sum(k * k, keepdims=True)))                      # [1, 1]

    # --- kvs: contract the node axis directly (no materialized transpose) ---
    kvs_full = jax.lax.dot_general(
        k.astype(jnp.bfloat16), v.astype(jnp.bfloat16),
        (((0,), (0,)), ((), ())), preferred_element_type=jnp.float32)       # [HD, HD]
    kvs_bd = (kvs_full * mask_ref[...] * c).astype(jnp.bfloat16)            # block-diag

    # --- attention numerator: [N, HD] ---
    num = jnp.dot(q.astype(jnp.bfloat16), kvs_bd,
                  preferred_element_type=jnp.float32) + n_f * v

    # --- per-head normalizer: [N, H], then EUP approximate reciprocal ---
    ks_sum = jnp.sum(k, axis=0, keepdims=True) * c                          # [1, HD]
    denom = jnp.dot((q * ks_sum).astype(jnp.bfloat16), hsel_ref[...],
                    preferred_element_type=jnp.float32) + n_f               # [N, H]
    inv_denom = pl.reciprocal(denom, approx=True)                           # [N, H]
    inv_flat = jnp.dot(inv_denom.astype(jnp.bfloat16), hselt_ref[...],
                       preferred_element_type=jnp.float32)                  # [N, HD]

    # --- head mean folded into a lane-dense [HD, 128] averaging matmul ---
    o_ref[...] = jnp.dot((num * inv_flat).astype(jnp.bfloat16), avg_ref[...],
                         preferred_element_type=jnp.float32)                # [N, 128]


# ---------------------------------------------------------------------------
# One-time parameter / constant preparation (hoisted out of the forward call).
# ---------------------------------------------------------------------------
def prepare_params(params, num_heads, out_channels, out_pad=128):
    wq, bq, wk, bk, wv, bv = params
    H, D = num_heads, out_channels
    HD = H * D

    wkv = jnp.concatenate([wk, wv], axis=1)                 # [Cin, 2*HD]
    bkv = jnp.concatenate([bk, bv]).reshape(1, 2 * HD)
    bq2 = bq.reshape(1, HD)

    head_of = jnp.arange(HD) // D                           # flat-index -> head id
    d_of = jnp.arange(HD) % D                               # flat-index -> channel id
    kv_mask = (head_of[:, None] == head_of[None, :]).astype(jnp.float32)     # [HD, HD]
    head_sel = (head_of[:, None] == jnp.arange(H)[None, :]).astype(jnp.bfloat16)   # [HD, H]
    head_sel_t = jnp.transpose(head_sel)                                     # [H, HD]
    avg = jnp.where(d_of[:, None] == jnp.arange(out_pad)[None, :],
                    1.0 / H, 0.0).astype(jnp.bfloat16)                       # [HD, out_pad]

    return dict(
        wq=wq.astype(jnp.bfloat16), bq=bq2,
        wkv=wkv.astype(jnp.bfloat16), bkv=bkv,
        kv_mask=kv_mask, head_sel=head_sel, head_sel_t=head_sel_t, avg=avg,
    )


# ---------------------------------------------------------------------------
# TransConvLayer forward (use_weight=True, output_attn=False path)
# ---------------------------------------------------------------------------
def trans_conv_layer(query_input, source_input, prepared, num_heads, out_channels):
    n, _ = query_input.shape
    D = out_channels
    out_pad = prepared["avg"].shape[1]

    vmem_specs = [pl.BlockSpec(memory_space=pltpu.MemorySpace.VMEM) for _ in range(10)]
    out = pl.pallas_call(
        _fused_transconv_kernel,
        out_shape=jax.ShapeDtypeStruct((n, out_pad), jnp.float32),
        in_specs=vmem_specs,
        out_specs=pl.BlockSpec(memory_space=pltpu.MemorySpace.VMEM),
    )(query_input, source_input,
      prepared["wq"], prepared["bq"], prepared["wkv"], prepared["bkv"],
      prepared["kv_mask"], prepared["head_sel"], prepared["head_sel_t"],
      prepared["avg"])
    return out[:, :D]


# ---------------------------------------------------------------------------
# Pure-JAX f32 reference (mirrors the PyTorch code exactly) for correctness check.
# ---------------------------------------------------------------------------
def reference(query_input, source_input, params, num_heads, out_channels):
    wq, bq, wk, bk, wv, bv = params
    H, D = num_heads, out_channels
    q = (query_input @ wq + bq).reshape(-1, H, D)
    k = (source_input @ wk + bk).reshape(-1, H, D)
    v = (source_input @ wv + bv).reshape(-1, H, D)
    q = q / jnp.linalg.norm(q)
    k = k / jnp.linalg.norm(k)
    N = q.shape[0]
    kvs = jnp.einsum("lhm,lhd->hmd", k, v)
    num = jnp.einsum("nhm,hmd->nhd", q, kvs) + N * v
    ks_sum = jnp.einsum("lhm->hm", k)
    denom = jnp.einsum("nhm,hm->nh", q, ks_sum)[..., None] + N
    attn_out = num / denom
    return attn_out.mean(axis=1)


if __name__ == "__main__":
    # Small, TransConvLayer-consistent shapes: N nodes with in_channels features.
    N, in_channels, out_channels, num_heads = 64, 32, 16, 4

    key = jax.random.PRNGKey(0)
    kq, kk, kv, kbq, kbk, kbv, kx, ks = jax.random.split(key, 8)
    bound = 1.0 / jnp.sqrt(in_channels)  # PyTorch nn.Linear default init range
    shape_w = (in_channels, out_channels * num_heads)
    shape_b = (out_channels * num_heads,)
    params = (
        jax.random.uniform(kq, shape_w, jnp.float32, -bound, bound),
        jax.random.uniform(kbq, shape_b, jnp.float32, -bound, bound),
        jax.random.uniform(kk, shape_w, jnp.float32, -bound, bound),
        jax.random.uniform(kbk, shape_b, jnp.float32, -bound, bound),
        jax.random.uniform(kv, shape_w, jnp.float32, -bound, bound),
        jax.random.uniform(kbv, shape_b, jnp.float32, -bound, bound),
    )

    query_input = jax.random.normal(kx, (N, in_channels), jnp.float32)
    source_input = jax.random.normal(ks, (N, in_channels), jnp.float32)

    prepared = prepare_params(params, num_heads, out_channels)   # one-time prep
    out = trans_conv_layer(query_input, source_input, prepared, num_heads, out_channels)
    out = jax.block_until_ready(out)

    ref = jax.block_until_ready(
        reference(query_input, source_input, params, num_heads, out_channels)
    )
    assert out.shape == (N, out_channels), out.shape
    # Tolerance accounts for bf16 MXU operands (per the perf review) and the EUP
    # approximate reciprocal; accumulation and all elementwise math are f32.
    max_err = float(jnp.max(jnp.abs(out - ref)))
    assert jnp.allclose(out, ref, rtol=2e-2, atol=1e-2), max_err

    print("KERNEL_OK")
</pallas_src>

<mosaic_0001>
module attributes {stable_mosaic.version = 11 : i64} {
  func.func @_fused_transconv_kernel(%arg0: memref<64x32xf32, #tpu.memory_space<vmem>>, %arg1: memref<64x32xf32, #tpu.memory_space<vmem>>, %arg2: memref<32x64xbf16, #tpu.memory_space<vmem>>, %arg3: memref<1x64xf32, #tpu.memory_space<vmem>>, %arg4: memref<32x128xbf16, #tpu.memory_space<vmem>>, %arg5: memref<1x128xf32, #tpu.memory_space<vmem>>, %arg6: memref<64x64xf32, #tpu.memory_space<vmem>>, %arg7: memref<64x4xbf16, #tpu.memory_space<vmem>>, %arg8: memref<4x64xbf16, #tpu.memory_space<vmem>>, %arg9: memref<64x128xbf16, #tpu.memory_space<vmem>>, %arg10: memref<64x128xf32, #tpu.memory_space<vmem>>) attributes {dimension_semantics = [], scalar_prefetch = 0 : i64, scratch_operands = 0 : i64, tpu.core_type = #tpu.core_type<tc>} {
    %c0 = arith.constant 0 : index
    %c0_0 = arith.constant 0 : index
    %0 = vector.load %arg0[%c0, %c0_0] : memref<64x32xf32, #tpu.memory_space<vmem>>, vector<64x32xf32>
    %1 = arith.truncf %0 : vector<64x32xf32> to vector<64x32xbf16>
    %c0_1 = arith.constant 0 : index
    %c0_2 = arith.constant 0 : index
    %2 = vector.load %arg1[%c0_1, %c0_2] : memref<64x32xf32, #tpu.memory_space<vmem>>, vector<64x32xf32>
    %3 = arith.truncf %2 : vector<64x32xf32> to vector<64x32xbf16>
    %c0_3 = arith.constant 0 : index
    %c0_4 = arith.constant 0 : index
    %4 = vector.load %arg2[%c0_3, %c0_4] : memref<32x64xbf16, #tpu.memory_space<vmem>>, vector<32x64xbf16>
    %cst = arith.constant dense<0.000000e+00> : vector<64x64xf32>
    %5 = tpu.matmul %1, %4, %cst {dimension_numbers = #tpu.dot_dimension_numbers<[1], [0], [0], [1], [0, 0, 1, 1], [], []>} : vector<64x32xbf16>, vector<32x64xbf16>, vector<64x64xf32> -> vector<64x64xf32>
    %c0_5 = arith.constant 0 : index
    %c0_6 = arith.constant 0 : index
    %6 = vector.load %arg3[%c0_5, %c0_6] : memref<1x64xf32, #tpu.memory_space<vmem>>, vector<1x64xf32>
    %7 = vector.broadcast %6 : vector<1x64xf32> to vector<64x64xf32>
    %8 = arith.addf %5, %7 : vector<64x64xf32>
    %c0_7 = arith.constant 0 : index
    %c0_8 = arith.constant 0 : index
    %9 = vector.load %arg4[%c0_7, %c0_8] : memref<32x128xbf16, #tpu.memory_space<vmem>>, vector<32x128xbf16>
    %cst_9 = arith.constant dense<0.000000e+00> : vector<64x128xf32>
    %10 = tpu.matmul %3, %9, %cst_9 {dimension_numbers = #tpu.dot_dimension_numbers<[1], [0], [0], [1], [0, 0, 1, 1], [], []>} : vector<64x32xbf16>, vector<32x128xbf16>, vector<64x128xf32> -> vector<64x128xf32>
    %c0_10 = arith.constant 0 : index
    %c0_11 = arith.constant 0 : index
    %11 = vector.load %arg5[%c0_10, %c0_11] : memref<1x128xf32, #tpu.memory_space<vmem>>, vector<1x128xf32>
    %12 = vector.broadcast %11 : vector<1x128xf32> to vector<64x128xf32>
    %13 = arith.addf %10, %12 : vector<64x128xf32>
    %14 = vector.extract_strided_slice %13 {offsets = [0, 0], sizes = [64, 64], strides = [1, 1]} : vector<64x128xf32> to vector<64x64xf32>
    %15 = vector.extract_strided_slice %13 {offsets = [0, 64], sizes = [64, 64], strides = [1, 1]} : vector<64x128xf32> to vector<64x64xf32>
    %16 = arith.mulf %8, %8 : vector<64x64xf32>
    %17 = vector.shape_cast %16 : vector<64x64xf32> to vector<1x64x64xf32>
    %cst_12 = arith.constant dense<0.000000e+00> : vector<1xf32>
    %18 = vector.multi_reduction <add>, %17, %cst_12 [1, 2] : vector<1x64x64xf32> to vector<1xf32>
    %19 = vector.shape_cast %18 : vector<1xf32> to vector<1x1x1xf32>
    %20 = vector.extract %19[0, 0, 0] : f32 from vector<1x1x1xf32>
    %21 = vector.broadcast %20 : f32 to vector<1x1xf32>
    %22 = math.rsqrt %21 : vector<1x1xf32>
    %23 = arith.mulf %14, %14 : vector<64x64xf32>
    %24 = vector.shape_cast %23 : vector<64x64xf32> to vector<1x64x64xf32>
    %cst_13 = arith.constant dense<0.000000e+00> : vector<1xf32>
    %25 = vector.multi_reduction <add>, %24, %cst_13 [1, 2] : vector<1x64x64xf32> to vector<1xf32>
    %26 = vector.shape_cast %25 : vector<1xf32> to vector<1x1x1xf32>
    %27 = vector.extract %26[0, 0, 0] : f32 from vector<1x1x1xf32>
    %28 = vector.broadcast %27 : f32 to vector<1x1xf32>
    %29 = math.rsqrt %28 : vector<1x1xf32>
    %30 = arith.mulf %22, %29 : vector<1x1xf32>
    %31 = arith.truncf %14 : vector<64x64xf32> to vector<64x64xbf16>
    %32 = arith.truncf %15 : vector<64x64xf32> to vector<64x64xbf16>
    %cst_14 = arith.constant dense<0.000000e+00> : vector<64x64xf32>
    %33 = tpu.matmul %31, %32, %cst_14 {dimension_numbers = #tpu.dot_dimension_numbers<[0], [0], [1], [1], [0, 1, 1, 1], [], []>} : vector<64x64xbf16>, vector<64x64xbf16>, vector<64x64xf32> -> vector<64x64xf32>
    %c0_15 = arith.constant 0 : index
    %c0_16 = arith.constant 0 : index
    %34 = vector.load %arg6[%c0_15, %c0_16] : memref<64x64xf32, #tpu.memory_space<vmem>>, vector<64x64xf32>
    %35 = arith.mulf %33, %34 : vector<64x64xf32>
    %36 = vector.broadcast %30 : vector<1x1xf32> to vector<64x64xf32>
    %37 = arith.mulf %35, %36 : vector<64x64xf32>
    %38 = arith.truncf %37 : vector<64x64xf32> to vector<64x64xbf16>
    %39 = arith.truncf %8 : vector<64x64xf32> to vector<64x64xbf16>
    %cst_17 = arith.constant dense<0.000000e+00> : vector<64x64xf32>
    %40 = tpu.matmul %39, %38, %cst_17 {dimension_numbers = #tpu.dot_dimension_numbers<[1], [0], [0], [1], [0, 0, 1, 1], [], []>} : vector<64x64xbf16>, vector<64x64xbf16>, vector<64x64xf32> -> vector<64x64xf32>
    %cst_18 = arith.constant 6.400000e+01 : f32
    %41 = vector.broadcast %cst_18 : f32 to vector<64x64xf32>
    %42 = arith.mulf %41, %15 : vector<64x64xf32>
    %43 = arith.addf %40, %42 : vector<64x64xf32>
    %cst_19 = arith.constant dense<0.000000e+00> : vector<64xf32>
    %44 = vector.multi_reduction <add>, %14, %cst_19 [0] : vector<64x64xf32> to vector<64xf32>
    %45 = vector.shape_cast %44 : vector<64xf32> to vector<1x64xf32>
    %46 = vector.broadcast %30 : vector<1x1xf32> to vector<1x64xf32>
    %47 = arith.mulf %45, %46 : vector<1x64xf32>
    %48 = vector.broadcast %47 : vector<1x64xf32> to vector<64x64xf32>
    %49 = arith.mulf %8, %48 : vector<64x64xf32>
    %50 = arith.truncf %49 : vector<64x64xf32> to vector<64x64xbf16>
    %c0_20 = arith.constant 0 : index
    %c0_21 = arith.constant 0 : index
    %51 = vector.load %arg7[%c0_20, %c0_21] : memref<64x4xbf16, #tpu.memory_space<vmem>>, vector<64x4xbf16>
    %cst_22 = arith.constant dense<0.000000e+00> : vector<64x4xf32>
    %52 = tpu.matmul %50, %51, %cst_22 {dimension_numbers = #tpu.dot_dimension_numbers<[1], [0], [0], [1], [0, 0, 1, 1], [], []>} : vector<64x64xbf16>, vector<64x4xbf16>, vector<64x4xf32> -> vector<64x4xf32>
    %cst_23 = arith.constant 6.400000e+01 : f32
    %53 = vector.broadcast %cst_23 : f32 to vector<64x4xf32>
    %54 = arith.addf %52, %53 : vector<64x4xf32>
    %55 = tpu.reciprocal %54 {approx = true} : vector<64x4xf32> -> vector<64x4xf32>
    %56 = arith.truncf %55 : vector<64x4xf32> to vector<64x4xbf16>
    %c0_24 = arith.constant 0 : index
    %c0_25 = arith.constant 0 : index
    %57 = vector.load %arg8[%c0_24, %c0_25] : memref<4x64xbf16, #tpu.memory_space<vmem>>, vector<4x64xbf16>
    %cst_26 = arith.constant dense<0.000000e+00> : vector<64x64xf32>
    %58 = tpu.matmul %56, %57, %cst_26 {dimension_numbers = #tpu.dot_dimension_numbers<[1], [0], [0], [1], [0, 0, 1, 1], [], []>} : vector<64x4xbf16>, vector<4x64xbf16>, vector<64x64xf32> -> vector<64x64xf32>
    %59 = arith.mulf %43, %58 : vector<64x64xf32>
    %60 = arith.truncf %59 : vector<64x64xf32> to vector<64x64xbf16>
    %c0_27 = arith.constant 0 : index
    %c0_28 = arith.constant 0 : index
    %61 = vector.load %arg9[%c0_27, %c0_28] : memref<64x128xbf16, #tpu.memory_space<vmem>>, vector<64x128xbf16>
    %cst_29 = arith.constant dense<0.000000e+00> : vector<64x128xf32>
    %62 = tpu.matmul %60, %61, %cst_29 {dimension_numbers = #tpu.dot_dimension_numbers<[1], [0], [0], [1], [0, 0, 1, 1], [], []>} : vector<64x64xbf16>, vector<64x128xbf16>, vector<64x128xf32> -> vector<64x128xf32>
    %c0_30 = arith.constant 0 : index
    %c0_31 = arith.constant 0 : index
    %63 = vector.load %arg10[%c0_30, %c0_31] : memref<64x128xf32, #tpu.memory_space<vmem>>, vector<64x128xf32>
    tpu.vector_store %arg10[%c0_30, %c0_31], %62 {strides = array<i32>} : memref<64x128xf32, #tpu.memory_space<vmem>>, vector<64x128xf32>,
    return
  }
}

</mosaic_0001>

<llo_original>
// kernel: tpu_custom_call.1
$region0: #{tpu_custom_call.1}
  #allocation0 [shape = 'u32[]', space=smem, size = 0x4, offset = 0x4, fixed_abs, tag = 'smem constant byte address 0x4 - core index']
  #allocation1 [shape = 'u32[144,128]{1,0:T(1,128)}', space=vmem, size = 0x12000, scoped, tag = 'internal scratch']
  %s0 = inlined_call_operand.vmem [shape: f32[64,32], index: 0, kind: input, shape index: {}]
  %s1 = inlined_call_operand.vmem [shape: f32[64,32], index: 1, kind: input, shape index: {}]
  %s2 = inlined_call_operand.vmem [shape: bf16[32,64], index: 2, kind: input, shape index: {}]
  %s3 = inlined_call_operand.vmem [shape: f32[1,64], index: 3, kind: input, shape index: {}]
  %s4 = inlined_call_operand.vmem [shape: bf16[32,128], index: 4, kind: input, shape index: {}]
  %s5 = inlined_call_operand.vmem [shape: f32[1,128], index: 5, kind: input, shape index: {}]
  %s6 = inlined_call_operand.vmem [shape: f32[64,64], index: 6, kind: input, shape index: {}]
  %s7 = inlined_call_operand.vmem [shape: bf16[64,4], index: 7, kind: input, shape index: {}]
  %s8 = inlined_call_operand.vmem [shape: bf16[4,64], index: 8, kind: input, shape index: {}]
  %s9 = inlined_call_operand.vmem [shape: bf16[64,128], index: 9, kind: input, shape index: {}]
  %s10 = inlined_call_operand.hbm [shape: f32[64,128], index: 10, kind: output, shape index: {}]
  %s11 = sld [smem:[#allocation0]]
  $region50: #{tpu_custom_call.1} parent=0
    _
  %s13 = ssub.s32 1, %s11
  %s14 = scalar_select 0, %s13, %s11
  $region1: #{tpu_custom_call.1} parent=0
    #allocation2 [shape = 'u8[32768]{0}', space=vmem, size = 0x8000, scoped, tag = 'output window, operand 0, single buffered']
    #allocation3 [shape = 's32[1]{0}', space=sflag, size = 0x4, scoped, tag = 'scoped memory for tpu_custom_call.1']
    %15 = vsyncpa [#allocation3], 0
    // Predicated region
    $region2: #{tpu_custom_call.1} parent=1 // pred_check
      _
    $region3: #{tpu_custom_call.1} parent=1 // pred_check_branch
      %17 = sbr.rel (0) target = $region5
    $region4: #{tpu_custom_call.1} parent=1 // pred_region
      _
    $region5: #{tpu_custom_call.1} parent=1 // pred_fallthru
      _
    // Predicated region
    $region6: #{tpu_custom_call.1} parent=1 // pred_check
      _
    $region7: #{tpu_custom_call.1} parent=1 // pred_check_branch
      %19 = sbr.rel (0) target = $region9
    $region8: #{tpu_custom_call.1} parent=1 // pred_region
      _
    $region9: #{tpu_custom_call.1} parent=1 // pred_fallthru
      _
    // Predicated region
    $region10: #{tpu_custom_call.1} parent=1 // pred_check
      _
    $region11: #{tpu_custom_call.1} parent=1 // pred_check_branch
      %21 = sbr.rel (0) target = $region13
    $region12: #{tpu_custom_call.1} parent=1 // pred_region
      _
    $region13: #{tpu_custom_call.1} parent=1 // pred_fallthru
      _
    // Predicated region
    $region14: #{tpu_custom_call.1} parent=1 // pred_check
      _
    $region15: #{tpu_custom_call.1} parent=1 // pred_check_branch
      %23 = sbr.rel (0) target = $region17
    $region16: #{tpu_custom_call.1} parent=1 // pred_region
      _
    $region17: #{tpu_custom_call.1} parent=1 // pred_fallthru
      _
    // Predicated region
    $region18: #{tpu_custom_call.1} parent=1 // pred_check
      _
    $region19: #{tpu_custom_call.1} parent=1 // pred_check_branch
      %25 = sbr.rel (0) target = $region21
    $region20: #{tpu_custom_call.1} parent=1 // pred_region
      _
    $region21: #{tpu_custom_call.1} parent=1 // pred_fallthru
      _
    // Predicated region
    $region22: #{tpu_custom_call.1} parent=1 // pred_check
      _
    $region23: #{tpu_custom_call.1} parent=1 // pred_check_branch
      %27 = sbr.rel (0) target = $region25
    $region24: #{tpu_custom_call.1} parent=1 // pred_region
      _
    $region25: #{tpu_custom_call.1} parent=1 // pred_fallthru
      _
    // Predicated region
    $region26: #{tpu_custom_call.1} parent=1 // pred_check
      _
    $region27: #{tpu_custom_call.1} parent=1 // pred_check_branch
      %29 = sbr.rel (0) target = $region29
    $region28: #{tpu_custom_call.1} parent=1 // pred_region
      _
    $region29: #{tpu_custom_call.1} parent=1 // pred_fallthru
      _
    // Predicated region
    $region30: #{tpu_custom_call.1} parent=1 // pred_check
      _
    $region31: #{tpu_custom_call.1} parent=1 // pred_check_branch
      %31 = sbr.rel (0) target = $region33
    $region32: #{tpu_custom_call.1} parent=1 // pred_region
      _
    $region33: #{tpu_custom_call.1} parent=1 // pred_fallthru
      _
    // Predicated region
    $region34: #{tpu_custom_call.1} parent=1 // pred_check
      _
    $region35: #{tpu_custom_call.1} parent=1 // pred_check_branch
      %33 = sbr.rel (0) target = $region37
    $region36: #{tpu_custom_call.1} parent=1 // pred_region
      _
    $region37: #{tpu_custom_call.1} parent=1 // pred_fallthru
      _
    // Predicated region
    $region38: #{tpu_custom_call.1} parent=1 // pred_check
      _
    $region39: #{tpu_custom_call.1} parent=1 // pred_check_branch
      %35 = sbr.rel (0) target = $region41
    $region40: #{tpu_custom_call.1} parent=1 // pred_region
      _
    $region41: #{tpu_custom_call.1} parent=1 // pred_fallthru
      _
    %v37 = vld [vmem:[%s0] sm:$0xff]
    %v38 = vld [vmem:[%s0 + $0x8] sm:$0xff]
    %v39 = vld [vmem:[%s0 + $0x10] sm:$0xff]
    %v40 = vld [vmem:[%s0 + $0x18] sm:$0xff]
    %v41 = vld [vmem:[%s0 + $0x20] sm:$0xff]
    %v42 = vld [vmem:[%s0 + $0x28] sm:$0xff]
    %v43 = vld [vmem:[%s0 + $0x30] sm:$0xff]
    %v44 = vld [vmem:[%s0 + $0x38] sm:$0xff]
    %v45 = vpack.c.bf16 %v38, %v37
    %v46 = vpack.c.bf16 %v40, %v39
    %v47 = vpack.c.bf16 %v42, %v41
    %v48 = vpack.c.bf16 %v44, %v43
    %v49 = vld [vmem:[%s1] sm:$0xff]
    %v50 = vld [vmem:[%s1 + $0x8] sm:$0xff]
    %v51 = vld [vmem:[%s1 + $0x10] sm:$0xff]
    %v52 = vld [vmem:[%s1 + $0x18] sm:$0xff]
    %v53 = vld [vmem:[%s1 + $0x20] sm:$0xff]
    %v54 = vld [vmem:[%s1 + $0x28] sm:$0xff]
    %v55 = vld [vmem:[%s1 + $0x30] sm:$0xff]
    %v56 = vld [vmem:[%s1 + $0x38] sm:$0xff]
    %v57 = vpack.c.bf16 %v50, %v49
    %v58 = vpack.c.bf16 %v52, %v51
    %v59 = vpack.c.bf16 %v54, %v53
    %v60 = vpack.c.bf16 %v56, %v55
    %v61 = vld [vmem:[%s2] sm:$0xf]
    %v62 = vld [vmem:[%s2 + $0x4] sm:$0xf]
    %v63 = vld [vmem:[%s2 + $0x8] sm:$0xf]
    %v64 = vld [vmem:[%s2 + $0xc] sm:$0xf]
    %v65 = vld [vmem:[%s3] sm:$0x1]
    %v67 = vlaneseq
    %v68 = vshrl.u32 %v67, 7
    %v69 = vsub.s32 0, %v68
    %v70 = vrot.slane %v65, %v69
    %v76 = vunpack.c.l.b16 %v61
    %v77 = vunpack.c.l.b16 %v62
    %v78 = vunpack.c.l.b16 %v63
    %v79 = vunpack.c.l.b16 %v64
    %v80 = vpack.c.b16 %v77, %v76
    %v81 = vpack.c.b16 %v79, %v78
    %vm84 = vcmask 261120
    %v86 = vsel %vm84, %v45, 0
    %v89 = vsel %vm84, %v46, 0
    %v92 = vsel %vm84, %v47, 0
    %v95 = vsel %vm84, %v48, 0
    %97 = vmatprep.subr.bf16.mxu0 0
    %98 = vmatpush1.bf16.msra.mxu0 %v80
    %99 = vmatprep.subr.bf16.mxu0 0
    %100 = vmatpush1.bf16.msra.mxu0 %v81
    %101 = vmatprep.subr.bf16.mxu0 0
    %102 = vmatpush1.bf16.msra.mxu0 0
    %103 = vmatprep.subr.bf16.mxu0 0
    %104 = vmatpush1.bf16.msra.mxu0 0
    %105 = vmatprep.subr.bf16.mxu0 0
    %106 = vmatpush1.bf16.msra.mxu0 0
    %107 = vmatprep.subr.bf16.mxu0 0
    %108 = vmatpush1.bf16.msra.mxu0 0
    %109 = vmatprep.subr.bf16.mxu0 0
    %110 = vmatpush1.bf16.msra.mxu0 0
    %111 = vmatprep.subr.bf16.mxu0 0
    %112 = vmatpush1.bf16.msra.mxu0 0
    %113 = vmatprep.subr.bf16.mxu0 0
    %114 = vmatpush1.bf16.msra.mxu0 0
    %115 = vmatprep.subr.bf16.mxu0 0
    %116 = vmatpush1.bf16.msra.mxu0 0
    %117 = vmatprep.subr.bf16.mxu0 0
    %118 = vmatpush1.bf16.msra.mxu0 0
    %119 = vmatprep.subr.bf16.mxu0 0
    %120 = vmatpush1.bf16.msra.mxu0 0
    %121 = vmatprep.subr.bf16.mxu0 0
    %122 = vmatpush1.bf16.msra.mxu0 0
    %123 = vmatprep.subr.bf16.mxu0 0
    %124 = vmatpush1.bf16.msra.mxu0 0
    %125 = vmatprep.subr.bf16.mxu0 0
    %126 = vmatpush1.bf16.msra.mxu0 0
    %127 = vmatprep.subr.bf16.mxu0 0
    %128 = vmatpush1.bf16.msra.mxu0 0
    %129 = vmatprep.mubr.bf16.mxu0 0
    %130 = vmatmul.mubr.bf16.gmra.mrb[0].mxu0 %v86
    %v131 = vpop.f32.mrb[0].mxu0
    %v132 = vadd.f32 %v70, %v131
    %v133 = vpop.f32.mrb[0].mxu0
    %v134 = vpop.f32.mrb[0].mxu0
    %v135 = vadd.f32 %v70, %v134
    %v136 = vpop.f32.mrb[0].mxu0
    %137 = vmatprep.mubr.bf16.mxu0 0
    %138 = vmatmul.mubr.bf16.gmra.mrb[0].mxu0 %v89
    %v139 = vpop.f32.mrb[0].mxu0
    %v140 = vadd.f32 %v70, %v139
    %v141 = vpop.f32.mrb[0].mxu0
    %v142 = vpop.f32.mrb[0].mxu0
    %v143 = vadd.f32 %v70, %v142
    %v144 = vpop.f32.mrb[0].mxu0
    %145 = vmatprep.mubr.bf16.mxu0 0
    %146 = vmatmul.mubr.bf16.gmra.mrb[0].mxu0 %v92
    %v147 = vpop.f32.mrb[0].mxu0
    %v148 = vadd.f32 %v70, %v147
    %v149 = vpop.f32.mrb[0].mxu0
    %v150 = vpop.f32.mrb[0].mxu0
    %v151 = vadd.f32 %v70, %v150
    %v152 = vpop.f32.mrb[0].mxu0
    %153 = vmatprep.mubr.bf16.mxu0 0
    %154 = vmatmul.mubr.bf16.gmra.mrb[0].mxu0 %v95
    %v155 = vpop.f32.mrb[0].mxu0
    %v156 = vadd.f32 %v70, %v155
    %v157 = vpop.f32.mrb[0].mxu0
    %v158 = vpop.f32.mrb[0].mxu0
    %v159 = vadd.f32 %v70, %v158
    %v160 = vpop.f32.mrb[0].mxu0
    %161 = vdwg.mxu0
    %v162 = vld [vmem:[%s4] sm:$0xf]
    %v163 = vld [vmem:[%s4 + $0x4] sm:$0xf]
    %v164 = vld [vmem:[%s4 + $0x8] sm:$0xf]
    %v165 = vld [vmem:[%s4 + $0xc] sm:$0xf]
    %v166 = vld [vmem:[%s5] sm:$0x1]
    %v168 = vlaneseq
    %v169 = vshrl.u32 %v168, 7
    %v170 = vsub.s32 0, %v169
    %v171 = vrot.slane %v166, %v170
    %v177 = vunpack.c.l.b16 %v162
    %v178 = vunpack.c.l.b16 %v163
    %v179 = vunpack.c.l.b16 %v164
    %v180 = vunpack.c.l.b16 %v165
    %v181 = vpack.c.b16 %v178, %v177
    %v182 = vpack.c.b16 %v180, %v179
    %v186 = vsel %vm84, %v57, 0
    %v189 = vsel %vm84, %v58, 0
    %v192 = vsel %vm84, %v59, 0
    %v195 = vsel %vm84, %v60, 0
    %197 = vmatprep.subr.bf16.mxu0 0
    %198 = vmatpush1.bf16.msra.mxu0 %v181
    %199 = vmatprep.subr.bf16.mxu0 0
    %200 = vmatpush1.bf16.msra.mxu0 %v182
    %201 = vmatprep.subr.bf16.mxu0 0
    %202 = vmatpush1.bf16.msra.mxu0 0
    %203 = vmatprep.subr.bf16.mxu0 0
    %204 = vmatpush1.bf16.msra.mxu0 0
    %205 = vmatprep.subr.bf16.mxu0 0
    %206 = vmatpush1.bf16.msra.mxu0 0
    %207 = vmatprep.subr.bf16.mxu0 0
    %208 = vmatpush1.bf16.msra.mxu0 0
    %209 = vmatprep.subr.bf16.mxu0 0
    %210 = vmatpush1.bf16.msra.mxu0 0
    %211 = vmatprep.subr.bf16.mxu0 0
    %212 = vmatpush1.bf16.msra.mxu0 0
    %213 = vmatprep.subr.bf16.mxu0 0
    %214 = vmatpush1.bf16.msra.mxu0 0
    %215 = vmatprep.subr.bf16.mxu0 0
    %216 = vmatpush1.bf16.msra.mxu0 0
    %217 = vmatprep.subr.bf16.mxu0 0
    %218 = vmatpush1.bf16.msra.mxu0 0
    %219 = vmatprep.subr.bf16.mxu0 0
    %220 = vmatpush1.bf16.msra.mxu0 0
    %221 = vmatprep.subr.bf16.mxu0 0
    %222 = vmatpush1.bf16.msra.mxu0 0
    %223 = vmatprep.subr.bf16.mxu0 0
    %224 = vmatpush1.bf16.msra.mxu0 0
    %225 = vmatprep.subr.bf16.mxu0 0
    %226 = vmatpush1.bf16.msra.mxu0 0
    %227 = vmatprep.subr.bf16.mxu0 0
    %228 = vmatpush1.bf16.msra.mxu0 0
    %229 = vmatprep.mubr.bf16.mxu0 0
    %230 = vmatmul.mubr.bf16.gmra.mrb[0].mxu0 %v186
    %v231 = vpop.f32.mrb[0].mxu0
    %v232 = vadd.f32 %v171, %v231
    %v233 = vpop.f32.mrb[0].mxu0
    %v234 = vpop.f32.mrb[0].mxu0
    %v235 = vadd.f32 %v171, %v234
    %v236 = vpop.f32.mrb[0].mxu0
    %237 = vmatprep.mubr.bf16.mxu0 0
    %238 = vmatmul.mubr.bf16.gmra.mrb[0].mxu0 %v189
    %v239 = vpop.f32.mrb[0].mxu0
    %v240 = vadd.f32 %v171, %v239
    %v241 = vpop.f32.mrb[0].mxu0
    %v242 = vpop.f32.mrb[0].mxu0
    %v243 = vadd.f32 %v171, %v242
    %v244 = vpop.f32.mrb[0].mxu0
    %245 = vmatprep.mubr.bf16.mxu0 0
    %246 = vmatmul.mubr.bf16.gmra.mrb[0].mxu0 %v192
    %v247 = vpop.f32.mrb[0].mxu0
    %v248 = vadd.f32 %v171, %v247
    %v249 = vpop.f32.mrb[0].mxu0
    %v250 = vpop.f32.mrb[0].mxu0
    %v251 = vadd.f32 %v171, %v250
    %v252 = vpop.f32.mrb[0].mxu0
    %253 = vmatprep.mubr.bf16.mxu0 0
    %254 = vmatmul.mubr.bf16.gmra.mrb[0].mxu0 %v195
    %v255 = vpop.f32.mrb[0].mxu0
    %v256 = vadd.f32 %v171, %v255
    %v257 = vpop.f32.mrb[0].mxu0
    %v258 = vpop.f32.mrb[0].mxu0
    %v259 = vadd.f32 %v171, %v258
    %v260 = vpop.f32.mrb[0].mxu0
    %261 = vdwg.mxu0
    %v262 = vmul.f32 %v132, %v132
    %v263 = vmul.f32 %v135, %v135
    %v264 = vmul.f32 %v140, %v140
    %v265 = vmul.f32 %v143, %v143
    %v266 = vmul.f32 %v148, %v148
    %v267 = vmul.f32 %v151, %v151
    %v268 = vmul.f32 %v156, %v156
    %v269 = vmul.f32 %v159, %v159
    %vm270 = vcmask 523264
    %v271 = vsel %vm270, %v262, 0.0
    %v272 = vsel %vm270, %v263, 0.0
    %v273 = vadd.f32 %v271, %v272
    %v274 = vsel %vm270, %v264, 0.0
    %v275 = vadd.f32 %v273, %v274
    %v276 = vsel %vm270, %v265, 0.0
    %v277 = vadd.f32 %v275, %v276
    %v278 = vsel %vm270, %v266, 0.0
    %v279 = vadd.f32 %v277, %v278
    %v280 = vsel %vm270, %v267, 0.0
    %v281 = vadd.f32 %v279, %v280
    %v282 = vsel %vm270, %v268, 0.0
    %v283 = vadd.f32 %v281, %v282
    %v284 = vsel %vm270, %v269, 0.0
    %v285 = vadd.f32 %v283, %v284
    %286 = vadd.xlane.f32.xlu0 %v285
    %v287 = vpop.xlane.xlu0 %286
    %v288 = vrot.slane %v287, 4
    %v289 = vadd.f32 %v287, %v288
    %v290 = vrot.slane %v289, 2
    %v291 = vadd.f32 %v289, %v290
    %v292 = vrot.slane %v291, 1
    %v293 = vadd.f32 %v291, %v292
    %s294 = vtos %v293
    %v295 = vstv %s294
    %v296 = vrsqrt.pop %v295
    %v297 = vmul.f32 %v232, %v232
    %v298 = vmul.f32 %v235, %v235
    %v299 = vmul.f32 %v240, %v240
    %v300 = vmul.f32 %v243, %v243
    %v301 = vmul.f32 %v248, %v248
    %v302 = vmul.f32 %v251, %v251
    %v303 = vmul.f32 %v256, %v256
    %v304 = vmul.f32 %v259, %v259
    %v305 = vsel %vm270, %v297, 0.0
    %v306 = vsel %vm270, %v298, 0.0
    %v307 = vadd.f32 %v305, %v306
    %v308 = vsel %vm270, %v299, 0.0
    %v309 = vadd.f32 %v307, %v308
    %v310 = vsel %vm270, %v300, 0.0
    %v311 = vadd.f32 %v309, %v310
    %v312 = vsel %vm270, %v301, 0.0
    %v313 = vadd.f32 %v311, %v312
    %v314 = vsel %vm270, %v302, 0.0
    %v315 = vadd.f32 %v313, %v314
    %v316 = vsel %vm270, %v303, 0.0
    %v317 = vadd.f32 %v315, %v316
    %v318 = vsel %vm270, %v304, 0.0
    %v319 = vadd.f32 %v317, %v318
    %320 = vadd.xlane.f32.xlu0 %v319
    %v321 = vpop.xlane.xlu0 %320
    %v322 = vrot.slane %v321, 4
    %v323 = vadd.f32 %v321, %v322
    %v324 = vrot.slane %v323, 2
    %v325 = vadd.f32 %v323, %v324
    %v326 = vrot.slane %v325, 1
    %v327 = vadd.f32 %v325, %v326
    %s328 = vtos %v327
    %v329 = vstv %s328
    %v330 = vrsqrt.pop %v329
    %v331 = vmul.f32 %v296, %v330
    %v332 = vpack.c.bf16 %v235, %v232
    %v333 = vpack.c.bf16 %v243, %v240
    %v334 = vpack.c.bf16 %v251, %v248
    %v335 = vpack.c.bf16 %v259, %v256
    %336 = vxpose.xlu0.c.b16.start [1/8] %v332, 128
    %337 = vxpose.xlu0.c.b16.cont [2/8] %v333, 128
    %338 = vxpose.xlu0.c.b16.cont [3/8] %v334, 128
    %339 = vxpose.xlu0.c.b16.cont [4/8] %v335, 128
    %340 = vxpose.xlu0.c.b16.cont [5/8] 0, 128
    %341 = vxpose.xlu0.c.b16.cont [6/8] 0, 128
    %342 = vxpose.xlu0.c.b16.cont [7/8] 0, 128
    %343 = vxpose.xlu0.c.b16.end [8/8] 0, 128
    %v344 = vpop.trf.xlu0
    %v345 = vpop.trf.xlu0
    %v346 = vpop.trf.xlu0
    %v347 = vpop.trf.xlu0
    %v348 = vpop.trf.xlu0
    %v349 = vpop.trf.xlu0
    %v350 = vpop.trf.xlu0
    %v351 = vpop.trf.xlu0
    %356 = vrot.lane.b32.xlu0 %v332, 64
    %v357 = vpop.permute.xlu0 %356
    %358 = vrot.lane.b32.xlu0 %v333, 64
    %v359 = vpop.permute.xlu0 %358
    %360 = vrot.lane.b32.xlu0 %v334, 64
    %v361 = vpop.permute.xlu0 %360
    %362 = vrot.lane.b32.xlu0 %v335, 64
    %v363 = vpop.permute.xlu0 %362
    %v369 = vsel %vm270, %v344, 0
    %v372 = vsel %vm270, %v345, 0
    %v375 = vsel %vm270, %v346, 0
    %v378 = vsel %vm270, %v347, 0
    %380 = vmatprep.subr.bf16.mxu0 0
    %381 = vmatpush1.bf16.msra.mxu0 %v357
    %382 = vmatprep.subr.bf16.mxu0 0
    %383 = vmatpush1.bf16.msra.mxu0 %v359
    %384 = vmatprep.subr.bf16.mxu0 0
    %385 = vmatpush1.bf16.msra.mxu0 %v361
    %386 = vmatprep.subr.bf16.mxu0 0
    %387 = vmatpush1.bf16.msra.mxu0 %v363
    %388 = vmatprep.subr.bf16.mxu0 0
    %389 = vmatpush1.bf16.msra.mxu0 0
    %390 = vmatprep.subr.bf16.mxu0 0
    %391 = vmatpush1.bf16.msra.mxu0 0
    %392 = vmatprep.subr.bf16.mxu0 0
    %393 = vmatpush1.bf16.msra.mxu0 0
    %394 = vmatprep.subr.bf16.mxu0 0
    %395 = vmatpush1.bf16.msra.mxu0 0
    %396 = vmatprep.subr.bf16.mxu0 0
    %397 = vmatpush1.bf16.msra.mxu0 0
    %398 = vmatprep.subr.bf16.mxu0 0
    %399 = vmatpush1.bf16.msra.mxu0 0
    %400 = vmatprep.subr.bf16.mxu0 0
    %401 = vmatpush1.bf16.msra.mxu0 0
    %402 = vmatprep.subr.bf16.mxu0 0
    %403 = vmatpush1.bf16.msra.mxu0 0
    %404 = vmatprep.subr.bf16.mxu0 0
    %405 = vmatpush1.bf16.msra.mxu0 0
    %406 = vmatprep.subr.bf16.mxu0 0
    %407 = vmatpush1.bf16.msra.mxu0 0
    %408 = vmatprep.subr.bf16.mxu0 0
    %409 = vmatpush1.bf16.msra.mxu0 0
    %410 = vmatprep.subr.bf16.mxu0 0
    %411 = vmatpush1.bf16.msra.mxu0 0
    %412 = vmatprep.mubr.bf16.mxu0 0
    %413 = vmatmul.mubr.bf16.gmra.mrb[0].mxu0 %v369
    %v414 = vpop.f32.mrb[0].mxu0
    %v415 = vadd.f32 0.0, %v414
    %v416 = vpop.f32.mrb[0].mxu0
    %v417 = vpop.f32.mrb[0].mxu0
    %v418 = vadd.f32 0.0, %v417
    %v419 = vpop.f32.mrb[0].mxu0
    %420 = vmatprep.mubr.bf16.mxu0 0
    %421 = vmatmul.mubr.bf16.gmra.mrb[0].mxu0 %v372
    %v422 = vpop.f32.mrb[0].mxu0
    %v423 = vadd.f32 0.0, %v422
    %v424 = vpop.f32.mrb[0].mxu0
    %v425 = vpop.f32.mrb[0].mxu0
    %v426 = vadd.f32 0.0, %v425
    %v427 = vpop.f32.mrb[0].mxu0
    %428 = vmatprep.mubr.bf16.mxu0 0
    %429 = vmatmul.mubr.bf16.gmra.mrb[0].mxu0 %v375
    %v430 = vpop.f32.mrb[0].mxu0
    %v431 = vadd.f32 0.0, %v430
    %v432 = vpop.f32.mrb[0].mxu0
    %v433 = vpop.f32.mrb[0].mxu0
    %v434 = vadd.f32 0.0, %v433
    %v435 = vpop.f32.mrb[0].mxu0
    %436 = vmatprep.mubr.bf16.mxu0 0
    %437 = vmatmul.mubr.bf16.gmra.mrb[0].mxu0 %v378
    %v438 = vpop.f32.mrb[0].mxu0
    %v439 = vadd.f32 0.0, %v438
    %v440 = vpop.f32.mrb[0].mxu0
    %v441 = vpop.f32.mrb[0].mxu0
    %v442 = vadd.f32 0.0, %v441
    %v443 = vpop.f32.mrb[0].mxu0
    %444 = vdwg.mxu0
    %v445 = vld [vmem:[%s6] sm:$0xff]
    %v446 = vld [vmem:[%s6 + $0x8] sm:$0xff]
    %v447 = vld [vmem:[%s6 + $0x10] sm:$0xff]
    %v448 = vld [vmem:[%s6 + $0x18] sm:$0xff]
    %v449 = vld [vmem:[%s6 + $0x20] sm:$0xff]
    %v450 = vld [vmem:[%s6 + $0x28] sm:$0xff]
    %v451 = vld [vmem:[%s6 + $0x30] sm:$0xff]
    %v452 = vld [vmem:[%s6 + $0x38] sm:$0xff]
    %v453 = vmul.f32 %v415, %v445
    %v454 = vmul.f32 %v418, %v446
    %v455 = vmul.f32 %v423, %v447
    %v456 = vmul.f32 %v426, %v448
    %v457 = vmul.f32 %v431, %v449
    %v458 = vmul.f32 %v434, %v450
    %v459 = vmul.f32 %v439, %v451
    %v460 = vmul.f32 %v442, %v452
    %v461 = vmul.f32 %v453, %v331
    %v462 = vmul.f32 %v454, %v331
    %v463 = vmul.f32 %v455, %v331
    %v464 = vmul.f32 %v456, %v331
    %v465 = vmul.f32 %v457, %v331
    %v466 = vmul.f32 %v458, %v331
    %v467 = vmul.f32 %v459, %v331
    %v468 = vmul.f32 %v460, %v331
    %v469 = vpack.c.bf16 %v462, %v461
    %v470 = vpack.c.bf16 %v464, %v463
    %v471 = vpack.c.bf16 %v466, %v465
    %v472 = vpack.c.bf16 %v468, %v467
    %v473 = vpack.c.bf16 %v135, %v132
    %v474 = vpack.c.bf16 %v143, %v140
    %v475 = vpack.c.bf16 %v151, %v148
    %v476 = vpack.c.bf16 %v159, %v156
    %v477 = vmul.f32 %v232, 64.0
    %v478 = vmul.f32 %v235, 64.0
    %v479 = vmul.f32 %v240, 64.0
    %v480 = vmul.f32 %v243, 64.0
    %v481 = vmul.f32 %v248, 64.0
    %v482 = vmul.f32 %v251, 64.0
    %v483 = vmul.f32 %v256, 64.0
    %v484 = vmul.f32 %v259, 64.0
    %493 = vrot.lane.b32.xlu0 %v477, 64
    %v494 = vpop.permute.xlu0 %493
    %495 = vrot.lane.b32.xlu0 %v478, 64
    %v496 = vpop.permute.xlu0 %495
    %497 = vrot.lane.b32.xlu0 %v479, 64
    %v498 = vpop.permute.xlu0 %497
    %499 = vrot.lane.b32.xlu0 %v480, 64
    %v500 = vpop.permute.xlu0 %499
    %501 = vrot.lane.b32.xlu0 %v481, 64
    %v502 = vpop.permute.xlu0 %501
    %503 = vrot.lane.b32.xlu0 %v482, 64
    %v504 = vpop.permute.xlu0 %503
    %505 = vrot.lane.b32.xlu0 %v483, 64
    %v506 = vpop.permute.xlu0 %505
    %507 = vrot.lane.b32.xlu0 %v484, 64
    %v508 = vpop.permute.xlu0 %507
    %v518 = vsel %vm270, %v473, 0
    %v521 = vsel %vm270, %v474, 0
    %v524 = vsel %vm270, %v475, 0
    %v527 = vsel %vm270, %v476, 0
    %529 = vmatprep.subr.bf16.mxu0 0
    %530 = vmatpush1.bf16.msra.mxu0 %v469
    %531 = vmatprep.subr.bf16.mxu0 0
    %532 = vmatpush1.bf16.msra.mxu0 %v470
    %533 = vmatprep.subr.bf16.mxu0 0
    %534 = vmatpush1.bf16.msra.mxu0 %v471
    %535 = vmatprep.subr.bf16.mxu0 0
    %536 = vmatpush1.bf16.msra.mxu0 %v472
    %537 = vmatprep.subr.bf16.mxu0 0
    %538 = vmatpush1.bf16.msra.mxu0 0
    %539 = vmatprep.subr.bf16.mxu0 0
    %540 = vmatpush1.bf16.msra.mxu0 0
    %541 = vmatprep.subr.bf16.mxu0 0
    %542 = vmatpush1.bf16.msra.mxu0 0
    %543 = vmatprep.subr.bf16.mxu0 0
    %544 = vmatpush1.bf16.msra.mxu0 0
    %545 = vmatprep.subr.bf16.mxu0 0
    %546 = vmatpush1.bf16.msra.mxu0 0
    %547 = vmatprep.subr.bf16.mxu0 0
    %548 = vmatpush1.bf16.msra.mxu0 0
    %549 = vmatprep.subr.bf16.mxu0 0
    %550 = vmatpush1.bf16.msra.mxu0 0
    %551 = vmatprep.subr.bf16.mxu0 0
    %552 = vmatpush1.bf16.msra.mxu0 0
    %553 = vmatprep.subr.bf16.mxu0 0
    %554 = vmatpush1.bf16.msra.mxu0 0
    %555 = vmatprep.subr.bf16.mxu0 0
    %556 = vmatpush1.bf16.msra.mxu0 0
    %557 = vmatprep.subr.bf16.mxu0 0
    %558 = vmatpush1.bf16.msra.mxu0 0
    %559 = vmatprep.subr.bf16.mxu0 0
    %560 = vmatpush1.bf16.msra.mxu0 0
    %561 = vmatprep.mubr.bf16.mxu0 0
    %562 = vmatmul.mubr.bf16.gmra.mrb[0].mxu0 %v518
    %v563 = vpop.f32.mrb[0].mxu0
    %v564 = vadd.f32 %v494, %v563
    %v565 = vpop.f32.mrb[0].mxu0
    %v566 = vpop.f32.mrb[0].mxu0
    %v567 = vadd.f32 %v496, %v566
    %v568 = vpop.f32.mrb[0].mxu0
    %569 = vmatprep.mubr.bf16.mxu0 0
    %570 = vmatmul.mubr.bf16.gmra.mrb[0].mxu0 %v521
    %v571 = vpop.f32.mrb[0].mxu0
    %v572 = vadd.f32 %v498, %v571
    %v573 = vpop.f32.mrb[0].mxu0
    %v574 = vpop.f32.mrb[0].mxu0
    %v575 = vadd.f32 %v500, %v574
    %v576 = vpop.f32.mrb[0].mxu0
    %577 = vmatprep.mubr.bf16.mxu0 0
    %578 = vmatmul.mubr.bf16.gmra.mrb[0].mxu0 %v524
    %v579 = vpop.f32.mrb[0].mxu0
    %v580 = vadd.f32 %v502, %v579
    %v581 = vpop.f32.mrb[0].mxu0
    %v582 = vpop.f32.mrb[0].mxu0
    %v583 = vadd.f32 %v504, %v582
    %v584 = vpop.f32.mrb[0].mxu0
    %585 = vmatprep.mubr.bf16.mxu0 0
    %586 = vmatmul.mubr.bf16.gmra.mrb[0].mxu0 %v527
    %v587 = vpop.f32.mrb[0].mxu0
    %v588 = vadd.f32 %v506, %v587
    %v589 = vpop.f32.mrb[0].mxu0
    %v590 = vpop.f32.mrb[0].mxu0
    %v591 = vadd.f32 %v508, %v590
    %v592 = vpop.f32.mrb[0].mxu0
    %593 = vdwg.mxu0
    %v594 = vsel %vm270, %v232, 0.0
    %v595 = vsel %vm270, %v235, 0.0
    %v596 = vadd.f32 %v594, %v595
    %v597 = vsel %vm270, %v240, 0.0
    %v598 = vadd.f32 %v596, %v597
    %v599 = vsel %vm270, %v243, 0.0
    %v600 = vadd.f32 %v598, %v599
    %v601 = vsel %vm270, %v248, 0.0
    %v602 = vadd.f32 %v600, %v601
    %v603 = vsel %vm270, %v251, 0.0
    %v604 = vadd.f32 %v602, %v603
    %v605 = vsel %vm270, %v256, 0.0
    %v606 = vadd.f32 %v604, %v605
    %v607 = vsel %vm270, %v259, 0.0
    %v608 = vadd.f32 %v606, %v607
    %v609 = vrot.slane %v608, 4
    %v610 = vadd.f32 %v608, %v609
    %v611 = vrot.slane %v610, 2
    %v612 = vadd.f32 %v610, %v611
    %v613 = vrot.slane %v612, 1
    %v614 = vadd.f32 %v612, %v613
    %v615 = vmul.f32 %v614, %v331
    %v616 = vmul.f32 %v132, %v615
    %v617 = vmul.f32 %v135, %v615
    %v618 = vmul.f32 %v140, %v615
    %v619 = vmul.f32 %v143, %v615
    %v620 = vmul.f32 %v148, %v615
    %v621 = vmul.f32 %v151, %v615
    %v622 = vmul.f32 %v156, %v615
    %v623 = vmul.f32 %v159, %v615
    %v624 = vpack.c.bf16 %v617, %v616
    %v625 = vpack.c.bf16 %v619, %v618
    %v626 = vpack.c.bf16 %v621, %v620
    %v627 = vpack.c.bf16 %v623, %v622
    %v628 = vld [vmem:[%s7] sm:$0xf]
    %v629 = vld [vmem:[%s7 + $0x4] sm:$0xf]
    %v630 = vld [vmem:[%s7 + $0x8] sm:$0xf]
    %v631 = vld [vmem:[%s7 + $0xc] sm:$0xf]
    %v632 = vld [vmem:[%s7 + $0x10] sm:$0xf]
    %v633 = vld [vmem:[%s7 + $0x14] sm:$0xf]
    %v634 = vld [vmem:[%s7 + $0x18] sm:$0xf]
    %v635 = vld [vmem:[%s7 + $0x1c] sm:$0xf]
    %v644 = vunpack.c.l.b16 %v628
    %v645 = vunpack.c.l.b16 %v629
    %v646 = vunpack.c.l.b16 %v630
    %v647 = vunpack.c.l.b16 %v631
    %v648 = vunpack.c.l.b16 %v632
    %v649 = vunpack.c.l.b16 %v633
    %v650 = vunpack.c.l.b16 %v634
    %v651 = vunpack.c.l.b16 %v635
    %v652 = vpack.c.b16 %v645, %v644
    %v653 = vpack.c.b16 %v647, %v646
    %v654 = vpack.c.b16 %v649, %v648
    %v655 = vpack.c.b16 %v651, %v650
    %v661 = vsel %vm270, %v624, 0
    %v664 = vsel %vm270, %v625, 0
    %v667 = vsel %vm270, %v626, 0
    %v670 = vsel %vm270, %v627, 0
    %672 = vmatprep.subr.bf16.mxu0 0
    %673 = vmatpush1.bf16.msra.mxu0 %v652
    %674 = vmatprep.subr.bf16.mxu0 0
    %675 = vmatpush1.bf16.msra.mxu0 %v653
    %676 = vmatprep.subr.bf16.mxu0 0
    %677 = vmatpush1.bf16.msra.mxu0 %v654
    %678 = vmatprep.subr.bf16.mxu0 0
    %679 = vmatpush1.bf16.msra.mxu0 %v655
    %680 = vmatprep.subr.bf16.mxu0 0
    %681 = vmatpush1.bf16.msra.mxu0 0
    %682 = vmatprep.subr.bf16.mxu0 0
    %683 = vmatpush1.bf16.msra.mxu0 0
    %684 = vmatprep.subr.bf16.mxu0 0
    %685 = vmatpush1.bf16.msra.mxu0 0
    %686 = vmatprep.subr.bf16.mxu0 0
    %687 = vmatpush1.bf16.msra.mxu0 0
    %688 = vmatprep.subr.bf16.mxu0 0
    %689 = vmatpush1.bf16.msra.mxu0 0
    %690 = vmatprep.subr.bf16.mxu0 0
    %691 = vmatpush1.bf16.msra.mxu0 0
    %692 = vmatprep.subr.bf16.mxu0 0
    %693 = vmatpush1.bf16.msra.mxu0 0
    %694 = vmatprep.subr.bf16.mxu0 0
    %695 = vmatpush1.bf16.msra.mxu0 0
    %696 = vmatprep.subr.bf16.mxu0 0
    %697 = vmatpush1.bf16.msra.mxu0 0
    %698 = vmatprep.subr.bf16.mxu0 0
    %699 = vmatpush1.bf16.msra.mxu0 0
    %700 = vmatprep.subr.bf16.mxu0 0
    %701 = vmatpush1.bf16.msra.mxu0 0
    %702 = vmatprep.subr.bf16.mxu0 0
    %703 = vmatpush1.bf16.msra.mxu0 0
    %704 = vmatprep.mubr.bf16.mxu0 0
    %705 = vmatmul.mubr.bf16.gmra.mrb[0].mxu0 %v661
    %v706 = vpop.f32.mrb[0].mxu0
    %v707 = vadd.f32 64.0, %v706
    %v708 = vpop.f32.mrb[0].mxu0
    %v709 = vpop.f32.mrb[0].mxu0
    %v710 = vadd.f32 64.0, %v709
    %v711 = vpop.f32.mrb[0].mxu0
    %712 = vmatprep.mubr.bf16.mxu0 0
    %713 = vmatmul.mubr.bf16.gmra.mrb[0].mxu0 %v664
    %v714 = vpop.f32.mrb[0].mxu0
    %v715 = vadd.f32 64.0, %v714
    %v716 = vpop.f32.mrb[0].mxu0
    %v717 = vpop.f32.mrb[0].mxu0
    %v718 = vadd.f32 64.0, %v717
    %v719 = vpop.f32.mrb[0].mxu0
    %720 = vmatprep.mubr.bf16.mxu0 0
    %721 = vmatmul.mubr.bf16.gmra.mrb[0].mxu0 %v667
    %v722 = vpop.f32.mrb[0].mxu0
    %v723 = vadd.f32 64.0, %v722
    %v724 = vpop.f32.mrb[0].mxu0
    %v725 = vpop.f32.mrb[0].mxu0
    %v726 = vadd.f32 64.0, %v725
    %v727 = vpop.f32.mrb[0].mxu0
    %728 = vmatprep.mubr.bf16.mxu0 0
    %729 = vmatmul.mubr.bf16.gmra.mrb[0].mxu0 %v670
    %v730 = vpop.f32.mrb[0].mxu0
    %v731 = vadd.f32 64.0, %v730
    %v732 = vpop.f32.mrb[0].mxu0
    %v733 = vpop.f32.mrb[0].mxu0
    %v734 = vadd.f32 64.0, %v733
    %v735 = vpop.f32.mrb[0].mxu0
    %736 = vdwg.mxu0
    %v737 = vrcp.pop %v707
    %v738 = vrcp.pop %v710
    %v739 = vrcp.pop %v715
    %v740 = vrcp.pop %v718
    %v741 = vrcp.pop %v723
    %v742 = vrcp.pop %v726
    %v743 = vrcp.pop %v731
    %v744 = vrcp.pop %v734
    %v745 = vpack.c.bf16 %v738, %v737
    %v746 = vpack.c.bf16 %v740, %v739
    %v747 = vpack.c.bf16 %v742, %v741
    %v748 = vpack.c.bf16 %v744, %v743
    %v749 = vld [vmem:[%s8] sm:$0x3]
    %vm750 = vcmask 31744
    %v752 = vsel %vm750, %v745, 0
    %v755 = vsel %vm750, %v746, 0
    %v758 = vsel %vm750, %v747, 0
    %v761 = vsel %vm750, %v748, 0
    %vm763 = vcmask 1041408
    %v765 = vsel %vm763, %v749, 0
    %767 = vmatprep.subr.bf16.mxu0 0
    %768 = vmatpush1.bf16.msra.mxu0 %v765
    %769 = vmatprep.subr.bf16.mxu0 0
    %770 = vmatpush1.bf16.msra.mxu0 0
    %771 = vmatprep.subr.bf16.mxu0 0
    %772 = vmatpush1.bf16.msra.mxu0 0
    %773 = vmatprep.subr.bf16.mxu0 0
    %774 = vmatpush1.bf16.msra.mxu0 0
    %775 = vmatprep.subr.bf16.mxu0 0
    %776 = vmatpush1.bf16.msra.mxu0 0
    %777 = vmatprep.subr.bf16.mxu0 0
    %778 = vmatpush1.bf16.msra.mxu0 0
    %779 = vmatprep.subr.bf16.mxu0 0
    %780 = vmatpush1.bf16.msra.mxu0 0
    %781 = vmatprep.subr.bf16.mxu0 0
    %782 = vmatpush1.bf16.msra.mxu0 0
    %783 = vmatprep.subr.bf16.mxu0 0
    %784 = vmatpush1.bf16.msra.mxu0 0
    %785 = vmatprep.subr.bf16.mxu0 0
    %786 = vmatpush1.bf16.msra.mxu0 0
    %787 = vmatprep.subr.bf16.mxu0 0
    %788 = vmatpush1.bf16.msra.mxu0 0
    %789 = vmatprep.subr.bf16.mxu0 0
    %790 = vmatpush1.bf16.msra.mxu0 0
    %791 = vmatprep.subr.bf16.mxu0 0
    %792 = vmatpush1.bf16.msra.mxu0 0
    %793 = vmatprep.subr.bf16.mxu0 0
    %794 = vmatpush1.bf16.msra.mxu0 0
    %795 = vmatprep.subr.bf16.mxu0 0
    %796 = vmatpush1.bf16.msra.mxu0 0
    %797 = vmatprep.subr.bf16.mxu0 0
    %798 = vmatpush1.bf16.msra.mxu0 0
    %799 = vmatprep.mubr.bf16.mxu0 0
    %800 = vmatmul.mubr.bf16.gmra.mrb[0].mxu0 %v752
    %v801 = vpop.f32.mrb[0].mxu0
    %v802 = vadd.f32 0.0, %v801
    %v803 = vpop.f32.mrb[0].mxu0
    %v804 = vpop.f32.mrb[0].mxu0
    %v805 = vadd.f32 0.0, %v804
    %v806 = vpop.f32.mrb[0].mxu0
    %807 = vmatprep.mubr.bf16.mxu0 0
    %808 = vmatmul.mubr.bf16.gmra.mrb[0].mxu0 %v755
    %v809 = vpop.f32.mrb[0].mxu0
    %v810 = vadd.f32 0.0, %v809
    %v811 = vpop.f32.mrb[0].mxu0
    %v812 = vpop.f32.mrb[0].mxu0
    %v813 = vadd.f32 0.0, %v812
    %v814 = vpop.f32.mrb[0].mxu0
    %815 = vmatprep.mubr.bf16.mxu0 0
    %816 = vmatmul.mubr.bf16.gmra.mrb[0].mxu0 %v758
    %v817 = vpop.f32.mrb[0].mxu0
    %v818 = vadd.f32 0.0, %v817
    %v819 = vpop.f32.mrb[0].mxu0
    %v820 = vpop.f32.mrb[0].mxu0
    %v821 = vadd.f32 0.0, %v820
    %v822 = vpop.f32.mrb[0].mxu0
    %823 = vmatprep.mubr.bf16.mxu0 0
    %824 = vmatmul.mubr.bf16.gmra.mrb[0].mxu0 %v761
    %v825 = vpop.f32.mrb[0].mxu0
    %v826 = vadd.f32 0.0, %v825
    %v827 = vpop.f32.mrb[0].mxu0
    %v828 = vpop.f32.mrb[0].mxu0
    %v829 = vadd.f32 0.0, %v828
    %v830 = vpop.f32.mrb[0].mxu0
    %831 = vdwg.mxu0
    %v832 = vmul.f32 %v564, %v802
    %v833 = vmul.f32 %v567, %v805
    %v834 = vmul.f32 %v572, %v810
    %v835 = vmul.f32 %v575, %v813
    %v836 = vmul.f32 %v580, %v818
    %v837 = vmul.f32 %v583, %v821
    %v838 = vmul.f32 %v588, %v826
    %v839 = vmul.f32 %v591, %v829
    %v840 = vpack.c.bf16 %v833, %v832
    %v841 = vpack.c.bf16 %v835, %v834
    %v842 = vpack.c.bf16 %v837, %v836
    %v843 = vpack.c.bf16 %v839, %v838
    %v844 = vld [vmem:[%s9] sm:$0xf]
    %v845 = vld [vmem:[%s9 + $0x4] sm:$0xf]
    %v846 = vld [vmem:[%s9 + $0x8] sm:$0xf]
    %v847 = vld [vmem:[%s9 + $0xc] sm:$0xf]
    %v848 = vld [vmem:[%s9 + $0x10] sm:$0xf]
    %v849 = vld [vmem:[%s9 + $0x14] sm:$0xf]
    %v850 = vld [vmem:[%s9 + $0x18] sm:$0xf]
    %v851 = vld [vmem:[%s9 + $0x1c] sm:$0xf]
    %v860 = vunpack.c.l.b16 %v844
    %v861 = vunpack.c.l.b16 %v845
    %v862 = vunpack.c.l.b16 %v846
    %v863 = vunpack.c.l.b16 %v847
    %v864 = vunpack.c.l.b16 %v848
    %v865 = vunpack.c.l.b16 %v849
    %v866 = vunpack.c.l.b16 %v850
    %v867 = vunpack.c.l.b16 %v851
    %v868 = vpack.c.b16 %v861, %v860
    %v869 = vpack.c.b16 %v863, %v862
    %v870 = vpack.c.b16 %v865, %v864
    %v871 = vpack.c.b16 %v867, %v866
    %v877 = vsel %vm270, %v840, 0
    %v880 = vsel %vm270, %v841, 0
    %v883 = vsel %vm270, %v842, 0
    %v886 = vsel %vm270, %v843, 0
    %888 = vmatprep.subr.bf16.mxu0 0
    %889 = vmatpush1.bf16.msra.mxu0 %v868
    %890 = vmatprep.subr.bf16.mxu0 0
    %891 = vmatpush1.bf16.msra.mxu0 %v869
    %892 = vmatprep.subr.bf16.mxu0 0
    %893 = vmatpush1.bf16.msra.mxu0 %v870
    %894 = vmatprep.subr.bf16.mxu0 0
    %895 = vmatpush1.bf16.msra.mxu0 %v871
    %896 = vmatprep.subr.bf16.mxu0 0
    %897 = vmatpush1.bf16.msra.mxu0 0
    %898 = vmatprep.subr.bf16.mxu0 0
    %899 = vmatpush1.bf16.msra.mxu0 0
    %900 = vmatprep.subr.bf16.mxu0 0
    %901 = vmatpush1.bf16.msra.mxu0 0
    %902 = vmatprep.subr.bf16.mxu0 0
    %903 = vmatpush1.bf16.msra.mxu0 0
    %904 = vmatprep.subr.bf16.mxu0 0
    %905 = vmatpush1.bf16.msra.mxu0 0
    %906 = vmatprep.subr.bf16.mxu0 0
    %907 = vmatpush1.bf16.msra.mxu0 0
    %908 = vmatprep.subr.bf16.mxu0 0
    %909 = vmatpush1.bf16.msra.mxu0 0
    %910 = vmatprep.subr.bf16.mxu0 0
    %911 = vmatpush1.bf16.msra.mxu0 0
    %912 = vmatprep.subr.bf16.mxu0 0
    %913 = vmatpush1.bf16.msra.mxu0 0
    %914 = vmatprep.subr.bf16.mxu0 0
    %915 = vmatpush1.bf16.msra.mxu0 0
    %916 = vmatprep.subr.bf16.mxu0 0
    %917 = vmatpush1.bf16.msra.mxu0 0
    %918 = vmatprep.subr.bf16.mxu0 0
    %919 = vmatpush1.bf16.msra.mxu0 0
    %920 = vmatprep.mubr.bf16.mxu0 0
    %921 = vmatmul.mubr.bf16.gmra.mrb[0].mxu0 %v877
    %v922 = vpop.f32.mrb[0].mxu0
    %v923 = vadd.f32 0.0, %v922
    %v924 = vpop.f32.mrb[0].mxu0
    %v925 = vpop.f32.mrb[0].mxu0
    %v926 = vadd.f32 0.0, %v925
    %v927 = vpop.f32.mrb[0].mxu0
    %928 = vmatprep.mubr.bf16.mxu0 0
    %929 = vmatmul.mubr.bf16.gmra.mrb[0].mxu0 %v880
    %v930 = vpop.f32.mrb[0].mxu0
    %v931 = vadd.f32 0.0, %v930
    %v932 = vpop.f32.mrb[0].mxu0
    %v933 = vpop.f32.mrb[0].mxu0
    %v934 = vadd.f32 0.0, %v933
    %v935 = vpop.f32.mrb[0].mxu0
    %936 = vmatprep.mubr.bf16.mxu0 0
    %937 = vmatmul.mubr.bf16.gmra.mrb[0].mxu0 %v883
    %v938 = vpop.f32.mrb[0].mxu0
    %v939 = vadd.f32 0.0, %v938
    %v940 = vpop.f32.mrb[0].mxu0
    %v941 = vpop.f32.mrb[0].mxu0
    %v942 = vadd.f32 0.0, %v941
    %v943 = vpop.f32.mrb[0].mxu0
    %944 = vmatprep.mubr.bf16.mxu0 0
    %945 = vmatmul.mubr.bf16.gmra.mrb[0].mxu0 %v886
    %v946 = vpop.f32.mrb[0].mxu0
    %v947 = vadd.f32 0.0, %v946
    %v948 = vpop.f32.mrb[0].mxu0
    %v949 = vpop.f32.mrb[0].mxu0
    %v950 = vadd.f32 0.0, %v949
    %v951 = vpop.f32.mrb[0].mxu0
    %952 = vdwg.mxu0
    %953 = vst [vmem:[#allocation2] sm:$0xff] %v923
    %954 = vst [vmem:[#allocation2 + $0x8] sm:$0xff] %v926
    %955 = vst [vmem:[#allocation2 + $0x10] sm:$0xff] %v931
    %956 = vst [vmem:[#allocation2 + $0x18] sm:$0xff] %v934
    %957 = vst [vmem:[#allocation2 + $0x20] sm:$0xff] %v939
    %958 = vst [vmem:[#allocation2 + $0x28] sm:$0xff] %v942
    %959 = vst [vmem:[#allocation2 + $0x30] sm:$0xff] %v947
    %960 = vst [vmem:[#allocation2 + $0x38] sm:$0xff] %v950
    // Predicated region
    $region42: #{tpu_custom_call.1} parent=1 // pred_check
      _
    $region43: #{tpu_custom_call.1} parent=1 // pred_check_branch
      %962 = sbr.rel (0) target = $region45
    $region44: #{tpu_custom_call.1} parent=1 // pred_region
      %s964 = ssub.s32 1024, 1024
      %965 = vsyncadd [#allocation3], %s964
      %s966 = sshll.u32 [#allocation2], 4
      %s967 = int_to_ptr.vmem [resolvable:$true] %s966
      %972 = dma.vmem_to_hbm [thread:$0]  %s967, 1024, %s10, [#allocation3], 128, 128, 8
    $region45: #{tpu_custom_call.1} parent=1 // pred_fallthru
      _
    // Predicated region
    $region46: #{tpu_custom_call.1} parent=1 // pred_check
      _
    $region47: #{tpu_custom_call.1} parent=1 // pred_check_branch
      %974 = sbr.rel (0) target = $region49
    $region48: #{tpu_custom_call.1} parent=1 // pred_region
      %975 = dma.done [#allocation3], 1024
    $region49: #{tpu_custom_call.1} parent=1 // pred_fallthru
      _
    %976 = vsyncpa [#allocation3], 1

</llo_original>
